<compile_context>
chip_gen: v5e
topology: v5e:2x2
jax: 0.10.0
libtpu: 0.0.40
codegen_flags: <defaults>
</compile_context>

<pallas_src>
import jax
import jax.numpy as jnp
from jax.experimental import pallas as pl
from jax.experimental.pallas import tpu as pltpu

_LANE = 512         # lane-dense last dim (multiple of 128)
_BLOCK_ROWS = 512   # 512x512 f32 block = 1 MiB; 2 bufs x 2 arrays ~= 4 MiB VMEM
                    # -> comfortably under scoped VMEM on v5e (16 MiB), v6e (32 MiB)
                    #    and v7x (64 MiB physical / 2 TCs).


def _identity_copy_kernel(x_ref, o_ref):
    # Straight copy of the current (block_rows, LANE) lane-dense tile.
    o_ref[...] = x_ref[...]


def _identity_copy(img):
    """Materialize an identity copy of `img` via a lane-dense Pallas copy kernel."""
    orig_shape = img.shape
    total = img.size
    lane = _LANE

    rows = pl.cdiv(total, lane)
    if rows <= _BLOCK_ROWS:
        # Single block covering the full (rows, lane) array: always legal
        # (block shape equals the full array extents), no sublane-multiple needed.
        block_rows = rows
        grid_rows = 1
    else:
        # Large blocks, 512 rows (multiple of 8 sublanes) x 512 lanes.
        block_rows = _BLOCK_ROWS
        rows = pl.cdiv(rows, block_rows) * block_rows
        grid_rows = rows // block_rows

    padded_total = rows * lane
    flat = img.reshape(-1)
    if padded_total != total:
        flat = jnp.pad(flat, (0, padded_total - total))
    slab = flat.reshape(rows, lane)

    out = pl.pallas_call(
        _identity_copy_kernel,
        out_shape=jax.ShapeDtypeStruct((rows, lane), img.dtype),
        grid=(grid_rows,),
        in_specs=[pl.BlockSpec((block_rows, lane), lambda i: (i, 0))],
        out_specs=pl.BlockSpec((block_rows, lane), lambda i: (i, 0)),
        compiler_params=pltpu.CompilerParams(
            dimension_semantics=("parallel",),
        ),
        cost_estimate=pl.CostEstimate(
            flops=0,
            transcendentals=0,
            bytes_accessed=2 * padded_total * img.dtype.itemsize,
        ),
    )(slab)

    # Strip padding (if any) and restore the original NCHW shape.
    return out.reshape(-1)[:total].reshape(orig_shape)


def use_image(img_params, *, materialize=False):
    """Pallas equivalent of UseImage.forward.

    Default path does exactly what the PyTorch module does: return the 'img'
    entry with zero work (no kernel launch, no copy). Set materialize=True to
    force a fresh buffer produced by the lane-dense Pallas copy kernel.
    """
    img = img_params["img"]
    if not materialize:
        return img
    return _identity_copy(img)


if __name__ == "__main__":
    key = jax.random.PRNGKey(0)
    # Small NCHW image consistent with a typical transform input.
    img = jax.random.normal(key, (2, 4, 16, 16), dtype=jnp.float32)
    img_params = {"img": img}

    # Fast path: pure passthrough (the faithful module semantics).
    passthrough = use_image(img_params)
    assert passthrough is img

    # Materialized path: exercise the Pallas identity-copy kernel once.
    out = use_image(img_params, materialize=True)
    out = jax.block_until_ready(out)

    assert out.shape == img.shape and out.dtype == img.dtype
    assert bool(jnp.all(out == img))
    print("KERNEL_OK")
</pallas_src>

<mosaic_0001>
module attributes {stable_mosaic.version = 11 : i64} {
  func.func @_identity_copy_kernel(%arg0: i32, %arg1: memref<4x512xf32, #tpu.memory_space<vmem>>, %arg2: memref<4x512xf32, #tpu.memory_space<vmem>>) attributes {dimension_semantics = [#tpu.dimension_semantics<parallel>], iteration_bounds = array<i64: 1>, scalar_prefetch = 0 : i64, scratch_operands = 0 : i64, tpu.core_type = #tpu.core_type<tc>, window_params = [{transform_indices = @transform_0, window_bounds = array<i64: 4, 512>}, {transform_indices = @transform_1, window_bounds = array<i64: 4, 512>}]} {
    %c0 = arith.constant 0 : index
    %c0_0 = arith.constant 0 : index
    %0 = vector.load %arg1[%c0, %c0_0] : memref<4x512xf32, #tpu.memory_space<vmem>>, vector<4x512xf32>
    %c0_1 = arith.constant 0 : index
    %c0_2 = arith.constant 0 : index
    %1 = vector.load %arg2[%c0_1, %c0_2] : memref<4x512xf32, #tpu.memory_space<vmem>>, vector<4x512xf32>
    tpu.vector_store %arg2[%c0_1, %c0_2], %0 {strides = array<i32>} : memref<4x512xf32, #tpu.memory_space<vmem>>, vector<4x512xf32>,
    return
  }
  func.func @transform_0(%arg0: i32) -> (i32, i32) {
    %c0_i32 = arith.constant 0 : i32
    %c0_i32_0 = arith.constant 0 : i32
    return %arg0, %c0_i32 : i32, i32
  }
  func.func @transform_1(%arg0: i32) -> (i32, i32) {
    %c0_i32 = arith.constant 0 : i32
    %c0_i32_0 = arith.constant 0 : i32
    return %arg0, %c0_i32 : i32, i32
  }
}

</mosaic_0001>

<llo_original>
// kernel: tpu_custom_call.1
$region0: #{tpu_custom_call.1}
  #allocation0 [shape = 'u32[]', space=smem, size = 0x4, offset = 0x4, fixed_abs, tag = 'smem constant byte address 0x4 - core index']
  #allocation1 [shape = 'u32[72,128]{1,0:T(1,128)}', space=vmem, size = 0x9000, scoped, tag = 'internal scratch']
  %s0 = inlined_call_operand.hbm [shape: f32[4,512], index: 0, kind: input, shape index: {}]
  %s1 = inlined_call_operand.hbm [shape: f32[4,512], index: 1, kind: output, shape index: {}]
  %s2 = sld [smem:[#allocation0]]
  $region18: #{tpu_custom_call.1} parent=0
    _
  %s4 = ssub.s32 1, %s2
  %s5 = scalar_select 0, %s4, %s2
  $region1: #{tpu_custom_call.1} parent=0
    #allocation2 [shape = 'u8[8192]{0}', space=vmem, size = 0x2000, scoped, tag = 'input window, operand 0, single buffered']
    #allocation3 [shape = 's32[1]{0}', space=sflag, size = 0x4, scoped, tag = 'scoped memory for tpu_custom_call.1']
    #allocation4 [shape = 's32[1]{0}', space=sflag, size = 0x4, scoped, tag = 'scoped memory for tpu_custom_call.1']
    #allocation5 [shape = 'u8[8192]{0}', space=vmem, size = 0x2000, scoped, tag = 'output window, operand 0, single buffered']
    %6 = vsyncpa [#allocation3], 0
    %7 = vsyncpa [#allocation4], 0
    // Predicated region
    $region2: #{tpu_custom_call.1} parent=1 // pred_check
      _
    $region3: #{tpu_custom_call.1} parent=1 // pred_check_branch
      %9 = sbr.rel (0) target = $region5
    $region4: #{tpu_custom_call.1} parent=1 // pred_region
      %11 = vsyncadd [#allocation3], 0
      %s13 = sshll.u32 %s0, 4
      %s14 = int_to_ptr.hbm [resolvable:$true] %s13
      %s15 = sshll.u32 [#allocation2], 4
      %s16 = int_to_ptr.vmem [resolvable:$true] %s15
      %18 = dma.hbm_to_vmem [thread:$0]  %s14, 256, %s16, [#allocation3]
    $region5: #{tpu_custom_call.1} parent=1 // pred_fallthru
      _
    // Predicated region
    $region6: #{tpu_custom_call.1} parent=1 // pred_check
      _
    $region7: #{tpu_custom_call.1} parent=1 // pred_check_branch
      %20 = sbr.rel (0) target = $region9
    $region8: #{tpu_custom_call.1} parent=1 // pred_region
      %22 = dma.done [#allocation3], 256
    $region9: #{tpu_custom_call.1} parent=1 // pred_fallthru
      _
    %v23 = vld [vmem:[#allocation2] sm:$0xff]
    %v24 = vld [vmem:[#allocation2 + $0x8] sm:$0xff]
    %25 = vst [vmem:[#allocation5] sm:$0xff] %v23
    %26 = vst [vmem:[#allocation5 + $0x8] sm:$0xff] %v24
    // Predicated region
    $region10: #{tpu_custom_call.1} parent=1 // pred_check
      _
    $region11: #{tpu_custom_call.1} parent=1 // pred_check_branch
      %28 = sbr.rel (0) target = $region13
    $region12: #{tpu_custom_call.1} parent=1 // pred_region
      %30 = vsyncadd [#allocation4], 0
      %s32 = sshll.u32 [#allocation5], 4
      %s33 = int_to_ptr.vmem [resolvable:$true] %s32
      %s34 = sshll.u32 %s1, 4
      %s35 = int_to_ptr.hbm [resolvable:$true] %s34
      %37 = dma.vmem_to_hbm [thread:$0]  %s33, 256, %s35, [#allocation4]
    $region13: #{tpu_custom_call.1} parent=1 // pred_fallthru
      _
    // Predicated region
    $region14: #{tpu_custom_call.1} parent=1 // pred_check
      _
    $region15: #{tpu_custom_call.1} parent=1 // pred_check_branch
      %39 = sbr.rel (0) target = $region17
    $region16: #{tpu_custom_call.1} parent=1 // pred_region
      %41 = dma.done [#allocation4], 256
    $region17: #{tpu_custom_call.1} parent=1 // pred_fallthru
      _
    %42 = vsyncpa [#allocation3], 1
    %43 = vsyncpa [#allocation4], 1

</llo_original>
